<compile_context>
chip_gen: v5e
topology: v5e:2x2
jax: 0.10.0
libtpu: 0.0.40
codegen_flags: <defaults>
</compile_context>

<pallas_src>
import jax
import jax.numpy as jnp
from jax.experimental import pallas as pl
from jax.experimental.pallas import tpu as pltpu

B, S = 2, 8
D0, D1 = 64, 32          # interm_size = [64, 32]
BN_EPS = 1e-5            # torch.nn.BatchNorm1d default eps
PD_EPS = 1e-6            # torch pairwise_distance default eps
LRELU_SLOPE = 0.01       # torch.nn.LeakyReLU default

# Packed parameter slab layout (P_ROWS x 128 lanes, f32).  Every block start is
# sublane (8) aligned so the in-kernel static slices are cheap VMEM views.
LANES = 128
R_WATT = 0               # rows [0, 1)    : attention Linear(64,1) weight, lanes [0,64)
R_W1 = 8                 # rows [8, 72)   : Linear(64,32) weight, eval-BN folded in
R_W2 = R_W1 + D0         # rows [72, 104) : Linear(32,32) weight
R_B = R_W2 + D1          # row 104 = folded bias1, row 105 = bias2
P_ROWS = R_B + 8         # 112 rows -> 112*128*4 B = 56 KiB slab


def siamese_kernel(a_ref, x_ref, p_ref, out_ref, ws_ref):
    # Static slices of the packed parameter slab (single input DMA upstream).
    watt = p_ref[R_WATT:R_WATT + 1, 0:D0]            # (1, D0)
    w1 = p_ref[R_W1:R_W1 + D0, 0:D1]                 # (D0, D1)  BN folded
    w2 = p_ref[R_W2:R_W2 + D1, 0:D1]                 # (D1, D1)
    b1 = p_ref[R_B:R_B + 1, 0:D1]                    # (1, D1)   BN folded
    b2 = p_ref[R_B + 1:R_B + 2, 0:D1]                # (1, D1)

    def attend(xv):                                  # (B, S, D0) -> (B, D0)
        # Attention bias omitted: a constant logit shift cancels under softmax.
        logits = jnp.sum(xv * watt, axis=-1, keepdims=True)       # (B, S, 1)
        m = jnp.max(logits, axis=1, keepdims=True)
        e = jnp.exp(logits - m)                                   # (B, S, 1)
        num = jnp.sum(xv * e, axis=1)                             # (B, D0)
        den = jnp.sum(e, axis=1)                                  # (B, 1)
        # Deferred normalization: one reciprocal per row on the EUP.
        return num * pl.reciprocal(den, approx=True)

    # Stack the two weighted-sum halves so the MLP runs once at M = 2B.
    ws_ref[0:B, :] = attend(a_ref[...])
    ws_ref[B:2 * B, :] = attend(x_ref[...])
    ws = ws_ref[...]                                              # (2B, D0)

    # Linear(64,32) with folded eval BatchNorm
    h = jnp.dot(ws, w1, preferred_element_type=jnp.float32) + b1
    # LeakyReLU(0.01)
    h = jnp.where(h > 0, h, LRELU_SLOPE * h)
    # Linear(32,32)
    h = jnp.dot(h, w2, preferred_element_type=jnp.float32) + b2   # (2B, D1)

    # pairwise_distance: ||x1 - x2 + eps||_2 along feature dim
    d = h[:B, :] - h[B:, :] + PD_EPS
    out_ref[...] = jnp.sqrt(jnp.sum(d * d, axis=-1, keepdims=True))   # (B, 1)


def pack_params(params):
    """One-time (per model) param transform: fold eval-mode BatchNorm into the
    first Linear and pack every weight/bias into a single aligned f32 slab."""
    (watt, batt, w1, b1, gamma, beta, mu, var, w2, b2) = params
    del batt  # softmax is shift-invariant -> the attention bias is a no-op
    inv_std = gamma * jax.lax.rsqrt(var + BN_EPS)     # (1, D1)
    w1f = w1 * inv_std                                # (D0, D1)
    b1f = (b1 - mu) * inv_std + beta                  # (1, D1)
    slab = jnp.zeros((P_ROWS, LANES), jnp.float32)
    slab = slab.at[R_WATT, :D0].set(watt[0])
    slab = slab.at[R_W1:R_W1 + D0, :D1].set(w1f)
    slab = slab.at[R_W2:R_W2 + D1, :D1].set(w2)
    slab = slab.at[R_B, :D1].set(b1f[0])
    slab = slab.at[R_B + 1, :D1].set(b2[0])
    return slab


@jax.jit
def siamese_metric_forward(A, X, packed_params):
    vmem = pl.BlockSpec(memory_space=pltpu.MemorySpace.VMEM)
    out = pl.pallas_call(
        siamese_kernel,
        out_shape=jax.ShapeDtypeStruct((B, 1), jnp.float32),
        in_specs=[vmem, vmem, vmem],
        out_specs=vmem,
        scratch_shapes=[pltpu.VMEM((2 * B, D0), jnp.float32)],
    )(A, X, packed_params)
    return out.reshape(B)  # matches torch pairwise_distance output shape (B,)


def make_params(key):
    ks = jax.random.split(key, 6)
    watt = 0.1 * jax.random.normal(ks[0], (1, D0), jnp.float32)   # Linear(64,1).weight
    batt = jnp.full((1, 1), 0.05, jnp.float32)                    # Linear(64,1).bias
    w1 = 0.1 * jax.random.normal(ks[1], (D0, D1), jnp.float32)    # Linear(64,32) (in,out)
    b1 = 0.01 * jax.random.normal(ks[2], (1, D1), jnp.float32)
    gamma = 1.0 + 0.1 * jax.random.normal(ks[3], (1, D1), jnp.float32)
    beta = 0.05 * jnp.ones((1, D1), jnp.float32)
    mu = 0.02 * jax.random.normal(ks[4], (1, D1), jnp.float32)    # running_mean
    var = 1.0 + 0.1 * jnp.abs(jax.random.normal(ks[5], (1, D1), jnp.float32))  # running_var
    w2 = 0.1 * jax.random.normal(jax.random.fold_in(key, 7), (D1, D1), jnp.float32)
    b2 = 0.01 * jax.random.normal(jax.random.fold_in(key, 8), (1, D1), jnp.float32)
    return (watt, batt, w1, b1, gamma, beta, mu, var, w2, b2)


def _reference(A, X, params):
    """Pure-JAX reference of the un-fused / un-folded eval forward."""
    (watt, batt, w1, b1, gamma, beta, mu, var, w2, b2) = params

    def encode(xv):
        logits = jnp.sum(xv * watt, axis=-1, keepdims=True) + batt[0, 0]
        attn = jax.nn.softmax(logits, axis=1)
        ws = jnp.sum(xv * attn, axis=1)
        h = ws @ w1 + b1
        h = (h - mu) * (gamma / jnp.sqrt(var + BN_EPS)) + beta
        h = jnp.where(h > 0, h, LRELU_SLOPE * h)
        return h @ w2 + b2

    d = encode(A) - encode(X) + PD_EPS
    return jnp.sqrt(jnp.sum(d * d, axis=-1))


if __name__ == "__main__":
    key = jax.random.PRNGKey(0)
    ka, kx, kp = jax.random.split(key, 3)
    A = jax.random.normal(ka, (B, S, D0), jnp.float32)
    X = jax.random.normal(kx, (B, S, D0), jnp.float32)
    params = make_params(kp)

    packed = jax.block_until_ready(pack_params(params))  # once per model, off the hot path

    dist = siamese_metric_forward(A, X, packed)
    jax.block_until_ready(dist)

    ref = _reference(A, X, params)
    assert dist.shape == (B,) and bool(jnp.all(jnp.isfinite(dist)))
    # Tolerance slightly looser than exact math: the deferred softmax
    # normalization uses the EUP approximate reciprocal.
    assert bool(jnp.allclose(dist, ref, rtol=5e-3, atol=1e-4)), (dist, ref)
    print("KERNEL_OK")
</pallas_src>

<mosaic_0001>
module attributes {stable_mosaic.version = 11 : i64} {
  func.func @siamese_kernel(%arg0: memref<2x8x64xf32, #tpu.memory_space<vmem>>, %arg1: memref<2x8x64xf32, #tpu.memory_space<vmem>>, %arg2: memref<112x128xf32, #tpu.memory_space<vmem>>, %arg3: memref<2x1xf32, #tpu.memory_space<vmem>>, %arg4: memref<4x64xf32, #tpu.memory_space<vmem>>) attributes {dimension_semantics = [], scalar_prefetch = 0 : i64, scratch_operands = 1 : i64, tpu.core_type = #tpu.core_type<tc>} {
    %c0 = arith.constant 0 : index
    %c0_0 = arith.constant 0 : index
    %0 = vector.load %arg2[%c0, %c0_0] : memref<112x128xf32, #tpu.memory_space<vmem>>, vector<1x64xf32>
    %c8 = arith.constant 8 : index
    %c0_1 = arith.constant 0 : index
    %1 = vector.load %arg2[%c8, %c0_1] : memref<112x128xf32, #tpu.memory_space<vmem>>, vector<64x32xf32>
    %c72 = arith.constant 72 : index
    %c0_2 = arith.constant 0 : index
    %2 = vector.load %arg2[%c72, %c0_2] : memref<112x128xf32, #tpu.memory_space<vmem>>, vector<32x32xf32>
    %c104 = arith.constant 104 : index
    %c0_3 = arith.constant 0 : index
    %3 = vector.load %arg2[%c104, %c0_3] : memref<112x128xf32, #tpu.memory_space<vmem>>, vector<1x32xf32>
    %c105 = arith.constant 105 : index
    %c0_4 = arith.constant 0 : index
    %4 = vector.load %arg2[%c105, %c0_4] : memref<112x128xf32, #tpu.memory_space<vmem>>, vector<1x32xf32>
    %c0_5 = arith.constant 0 : index
    %c0_6 = arith.constant 0 : index
    %c0_7 = arith.constant 0 : index
    %5 = vector.load %arg0[%c0_5, %c0_6, %c0_7] : memref<2x8x64xf32, #tpu.memory_space<vmem>>, vector<2x8x64xf32>
    %6 = vector.shape_cast %0 : vector<1x64xf32> to vector<1x1x64xf32>
    %7 = vector.broadcast %6 : vector<1x1x64xf32> to vector<2x8x64xf32>
    %8 = arith.mulf %5, %7 : vector<2x8x64xf32>
    %cst = arith.constant dense<0.000000e+00> : vector<2x8xf32>
    %9 = vector.multi_reduction <add>, %8, %cst [2] : vector<2x8x64xf32> to vector<2x8xf32>
    %10 = vector.shape_cast %9 : vector<2x8xf32> to vector<2x8x1xf32>
    %cst_8 = arith.constant dense<0xFF800000> : vector<2x1xf32>
    %11 = vector.multi_reduction <maximumf>, %10, %cst_8 [1] : vector<2x8x1xf32> to vector<2x1xf32>
    %12 = vector.shape_cast %11 : vector<2x1xf32> to vector<2x1x1xf32>
    %13 = vector.broadcast %12 : vector<2x1x1xf32> to vector<2x8x1xf32>
    %14 = arith.subf %10, %13 : vector<2x8x1xf32>
    %15 = math.exp %14 : vector<2x8x1xf32>
    %16 = vector.broadcast %15 : vector<2x8x1xf32> to vector<2x8x64xf32>
    %17 = arith.mulf %5, %16 : vector<2x8x64xf32>
    %cst_9 = arith.constant dense<0.000000e+00> : vector<2x64xf32>
    %18 = vector.multi_reduction <add>, %17, %cst_9 [1] : vector<2x8x64xf32> to vector<2x64xf32>
    %cst_10 = arith.constant dense<0.000000e+00> : vector<2x1xf32>
    %19 = vector.multi_reduction <add>, %15, %cst_10 [1] : vector<2x8x1xf32> to vector<2x1xf32>
    %20 = tpu.reciprocal %19 {approx = true} : vector<2x1xf32> -> vector<2x1xf32>
    %21 = vector.broadcast %20 : vector<2x1xf32> to vector<2x64xf32>
    %22 = arith.mulf %18, %21 : vector<2x64xf32>
    %c0_11 = arith.constant 0 : index
    %c0_12 = arith.constant 0 : index
    %23 = vector.load %arg4[%c0_11, %c0_12] : memref<4x64xf32, #tpu.memory_space<vmem>>, vector<2x64xf32>
    tpu.vector_store %arg4[%c0_11, %c0_12], %22 {strides = array<i32>} : memref<4x64xf32, #tpu.memory_space<vmem>>, vector<2x64xf32>,
    %c0_13 = arith.constant 0 : index
    %c0_14 = arith.constant 0 : index
    %c0_15 = arith.constant 0 : index
    %24 = vector.load %arg1[%c0_13, %c0_14, %c0_15] : memref<2x8x64xf32, #tpu.memory_space<vmem>>, vector<2x8x64xf32>
    %25 = vector.shape_cast %0 : vector<1x64xf32> to vector<1x1x64xf32>
    %26 = vector.broadcast %25 : vector<1x1x64xf32> to vector<2x8x64xf32>
    %27 = arith.mulf %24, %26 : vector<2x8x64xf32>
    %cst_16 = arith.constant dense<0.000000e+00> : vector<2x8xf32>
    %28 = vector.multi_reduction <add>, %27, %cst_16 [2] : vector<2x8x64xf32> to vector<2x8xf32>
    %29 = vector.shape_cast %28 : vector<2x8xf32> to vector<2x8x1xf32>
    %cst_17 = arith.constant dense<0xFF800000> : vector<2x1xf32>
    %30 = vector.multi_reduction <maximumf>, %29, %cst_17 [1] : vector<2x8x1xf32> to vector<2x1xf32>
    %31 = vector.shape_cast %30 : vector<2x1xf32> to vector<2x1x1xf32>
    %32 = vector.broadcast %31 : vector<2x1x1xf32> to vector<2x8x1xf32>
    %33 = arith.subf %29, %32 : vector<2x8x1xf32>
    %34 = math.exp %33 : vector<2x8x1xf32>
    %35 = vector.broadcast %34 : vector<2x8x1xf32> to vector<2x8x64xf32>
    %36 = arith.mulf %24, %35 : vector<2x8x64xf32>
    %cst_18 = arith.constant dense<0.000000e+00> : vector<2x64xf32>
    %37 = vector.multi_reduction <add>, %36, %cst_18 [1] : vector<2x8x64xf32> to vector<2x64xf32>
    %cst_19 = arith.constant dense<0.000000e+00> : vector<2x1xf32>
    %38 = vector.multi_reduction <add>, %34, %cst_19 [1] : vector<2x8x1xf32> to vector<2x1xf32>
    %39 = tpu.reciprocal %38 {approx = true} : vector<2x1xf32> -> vector<2x1xf32>
    %40 = vector.broadcast %39 : vector<2x1xf32> to vector<2x64xf32>
    %41 = arith.mulf %37, %40 : vector<2x64xf32>
    %c2 = arith.constant 2 : index
    %c0_20 = arith.constant 0 : index
    %42 = vector.load %arg4[%c2, %c0_20] : memref<4x64xf32, #tpu.memory_space<vmem>>, vector<2x64xf32>
    tpu.vector_store %arg4[%c2, %c0_20], %41 {strides = array<i32>} : memref<4x64xf32, #tpu.memory_space<vmem>>, vector<2x64xf32>,
    %c0_21 = arith.constant 0 : index
    %c0_22 = arith.constant 0 : index
    %43 = vector.load %arg4[%c0_21, %c0_22] : memref<4x64xf32, #tpu.memory_space<vmem>>, vector<4x64xf32>
    %cst_23 = arith.constant dense<0.000000e+00> : vector<4x32xf32>
    %44 = tpu.matmul %43, %1, %cst_23 {dimension_numbers = #tpu.dot_dimension_numbers<[1], [0], [0], [1], [0, 0, 1, 1], [], []>} : vector<4x64xf32>, vector<64x32xf32>, vector<4x32xf32> -> vector<4x32xf32>
    %45 = vector.broadcast %3 : vector<1x32xf32> to vector<4x32xf32>
    %46 = arith.addf %44, %45 : vector<4x32xf32>
    %cst_24 = arith.constant 0.000000e+00 : f32
    %47 = vector.broadcast %cst_24 : f32 to vector<4x32xf32>
    %48 = arith.cmpf ogt, %46, %47 : vector<4x32xf32>
    %cst_25 = arith.constant 0.00999999977 : f32
    %49 = vector.broadcast %cst_25 : f32 to vector<4x32xf32>
    %50 = arith.mulf %49, %46 : vector<4x32xf32>
    %51 = arith.select %48, %46, %50 : vector<4x32xi1>, vector<4x32xf32>
    %cst_26 = arith.constant dense<0.000000e+00> : vector<4x32xf32>
    %52 = tpu.matmul %51, %2, %cst_26 {dimension_numbers = #tpu.dot_dimension_numbers<[1], [0], [0], [1], [0, 0, 1, 1], [], []>} : vector<4x32xf32>, vector<32x32xf32>, vector<4x32xf32> -> vector<4x32xf32>
    %53 = vector.broadcast %4 : vector<1x32xf32> to vector<4x32xf32>
    %54 = arith.addf %52, %53 : vector<4x32xf32>
    %55 = vector.extract_strided_slice %54 {offsets = [0, 0], sizes = [2, 32], strides = [1, 1]} : vector<4x32xf32> to vector<2x32xf32>
    %56 = vector.extract_strided_slice %54 {offsets = [2, 0], sizes = [2, 32], strides = [1, 1]} : vector<4x32xf32> to vector<2x32xf32>
    %57 = arith.subf %55, %56 : vector<2x32xf32>
    %cst_27 = arith.constant 9.99999997E-7 : f32
    %58 = vector.broadcast %cst_27 : f32 to vector<2x32xf32>
    %59 = arith.addf %57, %58 : vector<2x32xf32>
    %60 = arith.mulf %59, %59 : vector<2x32xf32>
    %cst_28 = arith.constant dense<0.000000e+00> : vector<2xf32>
    %61 = vector.multi_reduction <add>, %60, %cst_28 [1] : vector<2x32xf32> to vector<2xf32>
    %62 = vector.shape_cast %61 : vector<2xf32> to vector<2x1xf32>
    %63 = math.sqrt %62 : vector<2x1xf32>
    %c0_29 = arith.constant 0 : index
    %c0_30 = arith.constant 0 : index
    %64 = vector.load %arg3[%c0_29, %c0_30] : memref<2x1xf32, #tpu.memory_space<vmem>>, vector<2x1xf32>
    tpu.vector_store %arg3[%c0_29, %c0_30], %63 {strides = array<i32>} : memref<2x1xf32, #tpu.memory_space<vmem>>, vector<2x1xf32>,
    return
  }
}

</mosaic_0001>

<llo_original>
// kernel: siamese_metric_forward.1
$region0: #{siamese_metric_forward.1}
  #allocation0 [shape = 'u32[]', space=smem, size = 0x4, offset = 0x4, fixed_abs, tag = 'smem constant byte address 0x4 - core index']
  #allocation1 [shape = 'u32[72,128]{1,0:T(1,128)}', space=vmem, size = 0x9000, scoped, tag = 'internal scratch']
  #allocation2 [shape = 'f32[4,64]{1,0:T(4,128)}', space=vmem, size = 0x800, scoped, tag = 'scratch operand']
  %s0 = inlined_call_operand.hbm [shape: f32[2,8,64], index: 0, kind: input, shape index: {}]
  %s1 = inlined_call_operand.hbm [shape: f32[2,8,64], index: 1, kind: input, shape index: {}]
  %s2 = inlined_call_operand.hbm [shape: f32[112,128], index: 2, kind: input, shape index: {}]
  %s3 = inlined_call_operand.vmem [shape: f32[2,1], index: 3, kind: output, shape index: {}]
  %s4 = sld [smem:[#allocation0]]
  $region34: #{siamese_metric_forward.1} parent=0
    _
  %s6 = ssub.s32 1, %s4
  %s7 = scalar_select 0, %s6, %s4
  $region1: #{siamese_metric_forward.1} parent=0
    #allocation3 [shape = 'u8[8192]{0}', space=vmem, size = 0x2000, scoped, tag = 'input window, operand 0, single buffered']
    #allocation4 [shape = 's32[1]{0}', space=sflag, size = 0x4, scoped, tag = 'scoped memory for siamese_metric_forward.1']
    #allocation5 [shape = 'u8[8192]{0}', space=vmem, size = 0x2000, scoped, tag = 'input window, operand 1, single buffered']
    #allocation6 [shape = 's32[1]{0}', space=sflag, size = 0x4, scoped, tag = 'scoped memory for siamese_metric_forward.1']
    #allocation7 [shape = 'u8[57344]{0}', space=vmem, size = 0xe000, scoped, tag = 'input window, operand 2, single buffered']
    %8 = vsyncpa [#allocation4], 0
    %9 = vsyncpa [#allocation6], 0
    // Predicated region
    $region2: #{siamese_metric_forward.1} parent=1 // pred_check
      _
    $region3: #{siamese_metric_forward.1} parent=1 // pred_check_branch
      %11 = sbr.rel (0) target = $region5
    $region4: #{siamese_metric_forward.1} parent=1 // pred_region
      %13 = vsyncadd [#allocation4], 0
      %s14 = sshll.u32 %s0, 4
      %s15 = int_to_ptr.hbm [resolvable:$true] %s14
      %s16 = sshll.u32 [#allocation3], 4
      %s17 = int_to_ptr.vmem [resolvable:$true] %s16
      %22 = dma.hbm_to_vmem [thread:$0]  %s15, 256, %s17, [#allocation4], 128, 128, 8
    $region5: #{siamese_metric_forward.1} parent=1 // pred_fallthru
      _
    // Predicated region
    $region6: #{siamese_metric_forward.1} parent=1 // pred_check
      _
    $region7: #{siamese_metric_forward.1} parent=1 // pred_check_branch
      %24 = sbr.rel (0) target = $region9
    $region8: #{siamese_metric_forward.1} parent=1 // pred_region
      %26 = vsyncadd [#allocation6], 0
      %s27 = sshll.u32 %s1, 4
      %s28 = int_to_ptr.hbm [resolvable:$true] %s27
      %s29 = sshll.u32 [#allocation5], 4
      %s30 = int_to_ptr.vmem [resolvable:$true] %s29
      %35 = dma.hbm_to_vmem [thread:$0]  %s28, 256, %s30, [#allocation6], 128, 128, 8
    $region9: #{siamese_metric_forward.1} parent=1 // pred_fallthru
      _
    // Predicated region
    $region10: #{siamese_metric_forward.1} parent=1 // pred_check
      _
    $region11: #{siamese_metric_forward.1} parent=1 // pred_check_branch
      %37 = sbr.rel (0) target = $region13
    $region12: #{siamese_metric_forward.1} parent=1 // pred_region
      %39 = vsyncadd [#allocation6], 0
      %s40 = sshll.u32 %s2, 4
      %s41 = int_to_ptr.hbm [resolvable:$true] %s40
      %s42 = sshll.u32 [#allocation7], 4
      %s43 = int_to_ptr.vmem [resolvable:$true] %s42
      %48 = dma.hbm_to_vmem [thread:$0]  %s41, 1792, %s43, [#allocation6], 128, 128, 8
    $region13: #{siamese_metric_forward.1} parent=1 // pred_fallthru
      _
    // Predicated region
    $region14: #{siamese_metric_forward.1} parent=1 // pred_check
      _
    $region15: #{siamese_metric_forward.1} parent=1 // pred_check_branch
      %50 = sbr.rel (0) target = $region17
    $region16: #{siamese_metric_forward.1} parent=1 // pred_region
      %52 = dma.done [#allocation4], 256
    $region17: #{siamese_metric_forward.1} parent=1 // pred_fallthru
      _
    // Predicated region
    $region18: #{siamese_metric_forward.1} parent=1 // pred_check
      _
    $region19: #{siamese_metric_forward.1} parent=1 // pred_check_branch
      %54 = sbr.rel (0) target = $region21
    $region20: #{siamese_metric_forward.1} parent=1 // pred_region
      %56 = dma.done [#allocation6], 256
    $region21: #{siamese_metric_forward.1} parent=1 // pred_fallthru
      _
    // Predicated region
    $region22: #{siamese_metric_forward.1} parent=1 // pred_check
      _
    $region23: #{siamese_metric_forward.1} parent=1 // pred_check_branch
      %58 = sbr.rel (0) target = $region25
    $region24: #{siamese_metric_forward.1} parent=1 // pred_region
      %60 = dma.done [#allocation6], 1792
    $region25: #{siamese_metric_forward.1} parent=1 // pred_fallthru
      _
    %v61 = vld [vmem:[#allocation7] sm:$0x1]
    %v62 = vld [vmem:[#allocation7 + $0x8] sm:$0xff]
    %v63 = vld [vmem:[#allocation7 + $0x10] sm:$0xff]
    %v64 = vld [vmem:[#allocation7 + $0x18] sm:$0xff]
    %v65 = vld [vmem:[#allocation7 + $0x20] sm:$0xff]
    %v66 = vld [vmem:[#allocation7 + $0x28] sm:$0xff]
    %v67 = vld [vmem:[#allocation7 + $0x30] sm:$0xff]
    %v68 = vld [vmem:[#allocation7 + $0x38] sm:$0xff]
    %v69 = vld [vmem:[#allocation7 + $0x40] sm:$0xff]
    %v70 = vld [vmem:[#allocation7 + $0x48] sm:$0xff]
    %v71 = vld [vmem:[#allocation7 + $0x50] sm:$0xff]
    %v72 = vld [vmem:[#allocation7 + $0x58] sm:$0xff]
    %v73 = vld [vmem:[#allocation7 + $0x60] sm:$0xff]
    %v74 = vld [vmem:[#allocation7 + $0x68] sm:$0x1]
    %v75 = vld [vmem:[#allocation7 + $0x69] sm:$0x1]
    %v76 = vld [vmem:[#allocation3] sm:$0xff]
    %v77 = vld [vmem:[#allocation3 + $0x8] sm:$0xff]
    %v78 = vperm.slane %v61, 0
    %v79 = vmul.f32 %v76, %v78
    %v80 = vmul.f32 %v77, %v78
    %vm81 = vcmask 523264
    %v82 = vsel %vm81, %v79, 0.0
    %83 = vadd.xlane.f32.xlu0 %v82
    %v84 = vpop.xlane.xlu0 %83
    %v85 = vsel %vm81, %v80, 0.0
    %86 = vadd.xlane.f32.xlu0 %v85
    %v87 = vpop.xlane.xlu0 %86
    %v88 = vrot.slane %v84, 4
    %v89 = vmax.f32 %v84, %v88
    %v90 = vrot.slane %v89, 2
    %v91 = vmax.f32 %v89, %v90
    %v92 = vrot.slane %v91, 1
    %v93 = vmax.f32 %v91, %v92
    %v94 = vrot.slane %v87, 4
    %v95 = vmax.f32 %v87, %v94
    %v96 = vrot.slane %v95, 2
    %v97 = vmax.f32 %v95, %v96
    %v98 = vrot.slane %v97, 1
    %v99 = vmax.f32 %v97, %v98
    %v100 = vsub.f32 %v84, %v93
    %v101 = vsub.f32 %v87, %v99
    %v102 = vmul.f32 %v100, 1.442695
    %v103 = vpow.pop %v102
    %v104 = vmul.f32 %v101, 1.442695
    %v105 = vpow.pop %v104
    %v106 = vmul.f32 %v76, %v103
    %v107 = vmul.f32 %v77, %v105
    %v108 = vsel %vm81, %v106, 0.0
    %v109 = vrot.slane %v108, 4
    %v110 = vadd.f32 %v108, %v109
    %v111 = vrot.slane %v110, 2
    %v112 = vadd.f32 %v110, %v111
    %v113 = vrot.slane %v112, 1
    %v114 = vadd.f32 %v112, %v113
    %v115 = vsel %vm81, %v107, 0.0
    %v116 = vrot.slane %v115, 4
    %v117 = vadd.f32 %v115, %v116
    %v118 = vrot.slane %v117, 2
    %v119 = vadd.f32 %v117, %v118
    %v120 = vrot.slane %v119, 1
    %v121 = vadd.f32 %v119, %v120
    %v122 = vrot.slane %v103, 4
    %v123 = vadd.f32 %v103, %v122
    %v124 = vrot.slane %v123, 2
    %v125 = vadd.f32 %v123, %v124
    %v126 = vrot.slane %v125, 1
    %v127 = vadd.f32 %v125, %v126
    %v128 = vrot.slane %v105, 4
    %v129 = vadd.f32 %v105, %v128
    %v130 = vrot.slane %v129, 2
    %v131 = vadd.f32 %v129, %v130
    %v132 = vrot.slane %v131, 1
    %v133 = vadd.f32 %v131, %v132
    %v134 = vrcp.pop %v127
    %v135 = vrcp.pop %v133
    %v136 = vmul.f32 %v114, %v134
    %v137 = vmul.f32 %v121, %v135
    %vm140 = vcmask 1041409
    %v141 = vsel %vm140, %v137, %v136
    %vm143 = vcmask 517120
    %144 = vst.msk [vmem:[#allocation2] sm:$0x3] %vm143, %v141
    %v145 = vld [vmem:[#allocation5] sm:$0xff]
    %v146 = vld [vmem:[#allocation5 + $0x8] sm:$0xff]
    %v147 = vmul.f32 %v145, %v78
    %v148 = vmul.f32 %v146, %v78
    %v149 = vsel %vm81, %v147, 0.0
    %150 = vadd.xlane.f32.xlu0 %v149
    %v151 = vpop.xlane.xlu0 %150
    %v152 = vsel %vm81, %v148, 0.0
    %153 = vadd.xlane.f32.xlu0 %v152
    %v154 = vpop.xlane.xlu0 %153
    %v155 = vrot.slane %v151, 4
    %v156 = vmax.f32 %v151, %v155
    %v157 = vrot.slane %v156, 2
    %v158 = vmax.f32 %v156, %v157
    %v159 = vrot.slane %v158, 1
    %v160 = vmax.f32 %v158, %v159
    %v161 = vrot.slane %v154, 4
    %v162 = vmax.f32 %v154, %v161
    %v163 = vrot.slane %v162, 2
    %v164 = vmax.f32 %v162, %v163
    %v165 = vrot.slane %v164, 1
    %v166 = vmax.f32 %v164, %v165
    %v167 = vsub.f32 %v151, %v160
    %v168 = vsub.f32 %v154, %v166
    %v169 = vmul.f32 %v167, 1.442695
    %v170 = vpow.pop %v169
    %v171 = vmul.f32 %v168, 1.442695
    %v172 = vpow.pop %v171
    %v173 = vmul.f32 %v145, %v170
    %v174 = vmul.f32 %v146, %v172
    %v175 = vsel %vm81, %v173, 0.0
    %v176 = vrot.slane %v175, 4
    %v177 = vadd.f32 %v175, %v176
    %v178 = vrot.slane %v177, 2
    %v179 = vadd.f32 %v177, %v178
    %v180 = vrot.slane %v179, 1
    %v181 = vadd.f32 %v179, %v180
    %v182 = vsel %vm81, %v174, 0.0
    %v183 = vrot.slane %v182, 4
    %v184 = vadd.f32 %v182, %v183
    %v185 = vrot.slane %v184, 2
    %v186 = vadd.f32 %v184, %v185
    %v187 = vrot.slane %v186, 1
    %v188 = vadd.f32 %v186, %v187
    %v189 = vrot.slane %v170, 4
    %v190 = vadd.f32 %v170, %v189
    %v191 = vrot.slane %v190, 2
    %v192 = vadd.f32 %v190, %v191
    %v193 = vrot.slane %v192, 1
    %v194 = vadd.f32 %v192, %v193
    %v195 = vrot.slane %v172, 4
    %v196 = vadd.f32 %v172, %v195
    %v197 = vrot.slane %v196, 2
    %v198 = vadd.f32 %v196, %v197
    %v199 = vrot.slane %v198, 1
    %v200 = vadd.f32 %v198, %v199
    %v201 = vrcp.pop %v194
    %v202 = vrcp.pop %v200
    %v203 = vmul.f32 %v181, %v201
    %v204 = vmul.f32 %v188, %v202
    %v207 = vsel %vm140, %v204, %v203
    %209 = vst.msk [vmem:[#allocation2 + $0x2] sm:$0x3] %vm143, %v207
    %v210 = vld [vmem:[#allocation2] sm:$0xf]
    %v211 = vperm.slane %v74, 0
    %v213 = vsel %vm81, %v210, 0
    %215 = vmatpush.msra.mxu0 0.0
    %216 = vmatpush.msra.mxu0 0.0
    %217 = vmatpush.msra.mxu0 0.0
    %218 = vmatpush.msra.mxu0 0.0
    %219 = vmatpush.msra.mxu0 0.0
    %220 = vmatpush.msra.mxu0 0.0
    %221 = vmatpush.msra.mxu0 0.0
    %222 = vmatpush.msra.mxu0 0.0
    %223 = vmatpush.msra.mxu0 %v69
    %224 = vmatpush.msra.mxu0 %v68
    %225 = vmatpush.msra.mxu0 %v67
    %226 = vmatpush.msra.mxu0 %v66
    %227 = vmatpush.msra.mxu0 %v65
    %228 = vmatpush.msra.mxu0 %v64
    %229 = vmatpush.msra.mxu0 %v63
    %230 = vmatpush.msra.mxu0 %v62
    %231 = vmatmul.f32.gmra.mxu0 %v213
    %v232 = vpop.f32.mrf.mxu0
    %v233 = vadd.f32 %v211, %v232
    %234 = vdwg.mxu0
    %vm235 = vcmp.gt.f32.partialorder %v233, 0.0
    %v236 = vmul.f32 %v233, 0.01
    %v237 = vsel %vm235, %v233, %v236
    %v238 = vperm.slane %v75, 0
    %vm239 = vcmask 261120
    %v241 = vsel %vm239, %v237, 0
    %243 = vmatpush.msra.mxu0 0.0
    %244 = vmatpush.msra.mxu0 0.0
    %245 = vmatpush.msra.mxu0 0.0
    %246 = vmatpush.msra.mxu0 0.0
    %247 = vmatpush.msra.mxu0 0.0
    %248 = vmatpush.msra.mxu0 0.0
    %249 = vmatpush.msra.mxu0 0.0
    %250 = vmatpush.msra.mxu0 0.0
    %251 = vmatpush.msra.mxu0 0.0
    %252 = vmatpush.msra.mxu0 0.0
    %253 = vmatpush.msra.mxu0 0.0
    %254 = vmatpush.msra.mxu0 0.0
    %255 = vmatpush.msra.mxu0 %v73
    %256 = vmatpush.msra.mxu0 %v72
    %257 = vmatpush.msra.mxu0 %v71
    %258 = vmatpush.msra.mxu0 %v70
    %259 = vmatmul.f32.gmra.mxu0 %v241
    %v260 = vpop.f32.mrf.mxu0
    %v261 = vadd.f32 %v238, %v260
    %262 = vdwg.mxu0
    %v264 = vrot.slane %v261, 2
    %v266 = vsub.f32 %v261, %v264
    %v267 = vadd.f32 %v266, 1e-06
    %v268 = vmul.f32 %v267, %v267
    %vm269 = vcmask 254976
    %v270 = vsel %vm269, %v268, 0.0
    %271 = vadd.xlane.f32.xlu0 %v270
    %v272 = vpop.xlane.xlu0 %271
    %v273 = vrsqrt.pop %v272
    %v274 = vmul.f32 %v273, %v272
    %v275 = vmul.f32 %v274, %v273
    %v276 = vmul.f32 0.5, %v275
    %v277 = vsub.f32 1.5, %v276
    %v278 = vmul.f32 %v273, %v277
    %v279 = vmul.f32 %v272, %v278
    %vm280 = vcmp.eq.f32.partialorder %v272, inf
    %v281 = vsel %vm280, %v272, %v279
    %vm282 = vcmp.eq.f32.partialorder %v272, 0.0
    %v283 = vand.u32 %v272, 2147483648
    %v284 = vsel %vm282, %v283, %v281
    %vm285 = vcmask 1024
    %286 = vst.msk [vmem:[%s3] sm:$0x3] %vm285, %v284
    // Predicated region
    $region26: #{siamese_metric_forward.1} parent=1 // pred_check
      _
    $region27: #{siamese_metric_forward.1} parent=1 // pred_check_branch
      %288 = sbr.rel (0) target = $region29
    $region28: #{siamese_metric_forward.1} parent=1 // pred_region
      _
    $region29: #{siamese_metric_forward.1} parent=1 // pred_fallthru
      _
    // Predicated region
    $region30: #{siamese_metric_forward.1} parent=1 // pred_check
      _
    $region31: #{siamese_metric_forward.1} parent=1 // pred_check_branch
      %290 = sbr.rel (0) target = $region33
    $region32: #{siamese_metric_forward.1} parent=1 // pred_region
      _
    $region33: #{siamese_metric_forward.1} parent=1 // pred_fallthru
      _
    %291 = vsyncpa [#allocation4], 1
    %292 = vsyncpa [#allocation6], 1

</llo_original>
